<compile_context>
chip_gen: v5e
topology: v5e:2x2
jax: 0.10.0
libtpu: 0.0.40
codegen_flags: <defaults>
</compile_context>

<pallas_src>
import functools

import jax
import jax.numpy as jnp
from jax.experimental import pallas as pl
from jax.experimental.pallas import tpu as pltpu

_LANE = 128  # vreg lane width (last dim)


def _round_up(x: int, m: int) -> int:
    return ((x + m - 1) // m) * m


def _cdiv(a: int, b: int) -> int:
    return (a + b - 1) // b


def _pad_to(a, shape):
    pads = tuple((0, s - d) for d, s in zip(a.shape, shape))
    if all(p == (0, 0) for p in pads):
        return a
    return jnp.pad(a, pads)


def _device_kind() -> str:
    try:
        return jax.devices()[0].device_kind.lower()
    except Exception:  # pragma: no cover - defensive
        return ""


def _mlp_kernel(x_ref, w0_ref, b0_ref, w1_ref, b1_ref, w2_ref, b2_ref, o_ref,
                *, activation: str, compute_dtype, bf16_tanh: bool):
    """Fused MLP: two hidden Linear+activation layers, then a final Linear."""

    def act(z):  # z is f32 (matmul accumulator + f32 bias)
        if activation == "tanh":
            if bf16_tanh:
                # v6e/v7x: bf16 EUP tanh (result feeds a bf16 matmul anyway).
                return jnp.tanh(z.astype(jnp.bfloat16))
            return jnp.tanh(z).astype(compute_dtype)
        return jnp.maximum(z, 0.0).astype(compute_dtype)

    # Cast to the MXU dtype inside the kernel (no extra HBM pass in wrapper).
    x = x_ref[...].astype(compute_dtype)

    # Layer 0: input_dim -> hidden_dim
    h = jnp.dot(x, w0_ref[...], preferred_element_type=jnp.float32)
    h = act(h + b0_ref[...])

    # Layer 1: hidden_dim -> hidden_dim
    h = jnp.dot(h, w1_ref[...], preferred_element_type=jnp.float32)
    h = act(h + b1_ref[...])

    # Last layer: hidden_dim -> output_dim (no activation)
    y = jnp.dot(h, w2_ref[...], preferred_element_type=jnp.float32)
    y = y + b2_ref[...]

    o_ref[...] = y.astype(o_ref.dtype)


def make_neural_net(params, *, activation: str = "relu",
                    mxu_precision: str = "bf16"):
    """Builds a fused Pallas forward fn; weight prep is hoisted (done once).

    Args:
      params: dict with w0 [in,hid], b0 [1,hid], w1 [hid,hid], b1 [1,hid],
              w2 [hid,out], b2 [1,out]  (weights pre-transposed vs PyTorch).
      activation: 'relu' or 'tanh'.
      mxu_precision: 'bf16' (MXU-native, f32 accumulation) or 'float32'.
    Returns:
      forward(x, batch_tile=1024) -> [batch..., output_dim]
    """
    assert activation in ("relu", "tanh")
    compute_dtype = jnp.bfloat16 if mxu_precision == "bf16" else jnp.float32

    input_dim, hidden_dim = params["w0"].shape
    output_dim = params["w2"].shape[1]

    hid_p = _round_up(hidden_dim, _LANE)
    # Tiny output dims: keep true width (masked partial store beats 32x HBM
    # write amplification + an extra slice pass). Lane-pad only when wide.
    out_k = _round_up(output_dim, _LANE) if output_dim >= 64 else output_dim

    # One-time weight/bias prep: pad hidden dims (exact: zero rows/cols
    # contribute 0; relu(0)=tanh(0)=0), cast weights to the MXU dtype, keep
    # biases in f32 (bias-add + activation run in f32).
    w0 = _pad_to(params["w0"], (input_dim, hid_p)).astype(compute_dtype)
    b0 = _pad_to(params["b0"], (1, hid_p)).astype(jnp.float32)
    w1 = _pad_to(params["w1"], (hid_p, hid_p)).astype(compute_dtype)
    b1 = _pad_to(params["b1"], (1, hid_p)).astype(jnp.float32)
    w2 = _pad_to(params["w2"], (hid_p, out_k)).astype(compute_dtype)
    b2 = _pad_to(params["b2"], (1, out_k)).astype(jnp.float32)

    kind = _device_kind()
    is_v5 = "v5" in kind
    two_tensorcores = "v7" in kind  # only v7x has 2 TCs per chip
    bf16_tanh = (activation == "tanh" and compute_dtype == jnp.bfloat16
                 and not is_v5)

    kernel = functools.partial(_mlp_kernel, activation=activation,
                               compute_dtype=compute_dtype,
                               bf16_tanh=bf16_tanh)

    # Single-buffer the (grid-invariant) weights only when they are big
    # enough for it to matter on v7x's 64 MiB VMEM.
    w_kw = {"pipeline_mode": pl.Buffered(1)} if hid_p >= 1024 else {}

    def forward(x, *, batch_tile: int = 1024):
        orig_shape = x.shape
        if x.ndim != 2:                      # support multi-dim batch_shape
            x = x.reshape((-1, orig_shape[-1]))
        batch = x.shape[0]
        assert x.shape[1] == input_dim

        # Sublane granularity: 16 for bf16 tiles, 8 for f32.
        gran = 16 if (compute_dtype == jnp.bfloat16
                      or x.dtype == jnp.bfloat16) else 8

        bt = min(batch_tile, _round_up(batch, gran))
        bt = max(gran, _round_up(bt, gran))
        # v7x megacore only: prefer >= 2 grid steps so both TCs get work.
        if two_tensorcores and batch >= 2 * _LANE and _cdiv(batch, bt) < 2:
            bt = _round_up(_cdiv(batch, 2), gran)
        grid = (_cdiv(batch, bt),)           # ragged last block is fine:
        # OOB input rows are padded garbage (rows are independent) and OOB
        # output rows are dropped, so no batch padding pass over x is needed.

        # VMEM budget (tile-padded estimate). Only raise the scoped limit
        # when we actually need more than the default; clamp to physical
        # capacity minus headroom (v7x has only 64 MiB).
        x_bytes = jnp.dtype(x.dtype).itemsize
        w_bytes = jnp.dtype(compute_dtype).itemsize
        n_wbuf = 1 if hid_p >= 1024 else 2
        est = 2 * bt * max(input_dim, _LANE) * x_bytes        # x tile (x2)
        est += 2 * bt * max(out_k, _LANE) * x_bytes           # out tile (x2)
        est += n_wbuf * ((input_dim * hid_p + hid_p * hid_p + hid_p * out_k)
                         * w_bytes + (2 * hid_p + out_k) * 4)
        est += 3 * bt * hid_p * 4                             # f32 temps
        compiler_kwargs = {}
        need = int(est * 1.5) + (2 << 20)
        if need > (16 << 20):                                 # > default scoped
            try:
                vmem_cap = pltpu.get_tpu_info().vmem_capacity_bytes
            except Exception:
                vmem_cap = 64 << 20                           # v7x-safe fallback
            compiler_kwargs["vmem_limit_bytes"] = int(
                min(need, vmem_cap - (4 << 20)))

        in_specs = [
            pl.BlockSpec((bt, input_dim), lambda i: (i, 0)),       # x (tiled)
            pl.BlockSpec((input_dim, hid_p), lambda i: (0, 0), **w_kw),
            pl.BlockSpec((1, hid_p), lambda i: (0, 0), **w_kw),
            pl.BlockSpec((hid_p, hid_p), lambda i: (0, 0), **w_kw),
            pl.BlockSpec((1, hid_p), lambda i: (0, 0), **w_kw),
            pl.BlockSpec((hid_p, out_k), lambda i: (0, 0), **w_kw),
            pl.BlockSpec((1, out_k), lambda i: (0, 0), **w_kw),
        ]
        out_specs = pl.BlockSpec((bt, out_k), lambda i: (i, 0))

        y = pl.pallas_call(
            kernel,
            out_shape=jax.ShapeDtypeStruct((batch, out_k), x.dtype),
            grid_spec=pltpu.PrefetchScalarGridSpec(
                num_scalar_prefetch=0,
                grid=grid,
                in_specs=in_specs,
                out_specs=out_specs,
            ),
            compiler_params=pltpu.CompilerParams(
                dimension_semantics=("parallel",), **compiler_kwargs),
        )(x, w0, b0, w1, b1, w2, b2)

        if out_k != output_dim:
            y = y[:, :output_dim]
        return y.reshape(orig_shape[:-1] + (output_dim,))

    return forward


def init_params(key, input_dim, hidden_dim, output_dim, dtype=jnp.float32):
    """nn.Linear-style init: U(-1/sqrt(fan_in), 1/sqrt(fan_in)).

    Weights stored as [in_features, out_features] (transpose of PyTorch's
    [out, in]) so the kernel computes x @ W directly on the MXU.
    """
    def linear(k, fan_in, fan_out):
        kw, kb = jax.random.split(k)
        bound = 1.0 / jnp.sqrt(fan_in)
        w = jax.random.uniform(kw, (fan_in, fan_out), jnp.float32, -bound, bound)
        b = jax.random.uniform(kb, (1, fan_out), jnp.float32, -bound, bound)
        return w.astype(dtype), b.astype(dtype)

    k0, k1, k2 = jax.random.split(key, 3)
    w0, b0 = linear(k0, input_dim, hidden_dim)
    w1, b1 = linear(k1, hidden_dim, hidden_dim)
    w2, b2 = linear(k2, hidden_dim, output_dim)
    return {"w0": w0, "b0": b0, "w1": w1, "b1": b1, "w2": w2, "b2": b2}


def _reference_forward(x, params, activation="relu"):
    act = jnp.tanh if activation == "tanh" else (lambda v: jnp.maximum(v, 0.0))
    h = act(x @ params["w0"] + params["b0"])
    h = act(h @ params["w1"] + params["b1"])
    return h @ params["w2"] + params["b2"]


if __name__ == "__main__":
    # Small shapes consistent with the module: input_dim=16, hidden_dim=32,
    # n_hidden_layers=2, output_dim=4.
    input_dim, hidden_dim, output_dim = 16, 32, 4

    key = jax.random.PRNGKey(0)
    k_x1, k_x2, k_p = jax.random.split(key, 3)
    params = init_params(k_p, input_dim, hidden_dim, output_dim)

    # Case 1: exact f32 MXU path, relu, batch=8, single grid step.
    x1 = jax.random.normal(k_x1, (8, input_dim), dtype=jnp.float32)
    net_relu_f32 = make_neural_net(params, activation="relu",
                                   mxu_precision="float32")
    y1 = jax.block_until_ready(net_relu_f32(x1))
    y1_ref = _reference_forward(x1, params, activation="relu")
    assert y1.shape == (8, output_dim)
    assert jnp.allclose(y1, y1_ref, atol=1e-5, rtol=1e-5), "relu f32 mismatch"

    # Case 2: bf16 MXU path, tanh, batch=20 with a small tile -> exercises the
    # ragged last grid block (no batch padding) and the tiny-output path.
    x2 = jax.random.normal(k_x2, (20, input_dim), dtype=jnp.float32)
    net_tanh_bf16 = make_neural_net(params, activation="tanh",
                                    mxu_precision="bf16")
    y2 = jax.block_until_ready(net_tanh_bf16(x2, batch_tile=8))
    y2_ref = _reference_forward(x2, params, activation="tanh")
    assert y2.shape == (20, output_dim)
    assert jnp.allclose(y2, y2_ref, atol=5e-2, rtol=5e-2), "tanh bf16 mismatch"

    print("KERNEL_OK")
</pallas_src>

<mosaic_0001>
module attributes {stable_mosaic.version = 11 : i64} {
  func.func @_mlp_kernel(%arg0: i32, %arg1: memref<8x16xf32, #tpu.memory_space<vmem>>, %arg2: memref<16x128xf32, #tpu.memory_space<vmem>>, %arg3: memref<1x128xf32, #tpu.memory_space<vmem>>, %arg4: memref<128x128xf32, #tpu.memory_space<vmem>>, %arg5: memref<1x128xf32, #tpu.memory_space<vmem>>, %arg6: memref<128x4xf32, #tpu.memory_space<vmem>>, %arg7: memref<1x4xf32, #tpu.memory_space<vmem>>, %arg8: memref<8x4xf32, #tpu.memory_space<vmem>>) attributes {dimension_semantics = [#tpu.dimension_semantics<parallel>], iteration_bounds = array<i64: 1>, scalar_prefetch = 0 : i64, scratch_operands = 0 : i64, tpu.core_type = #tpu.core_type<tc>, window_params = [{transform_indices = @transform_0, window_bounds = array<i64: 8, 16>}, {pipeline_mode = #tpu.pipeline_mode<synchronous>, transform_indices = @transform_1, window_bounds = array<i64: 16, 128>}, {pipeline_mode = #tpu.pipeline_mode<synchronous>, transform_indices = @transform_2, window_bounds = array<i64: 1, 128>}, {pipeline_mode = #tpu.pipeline_mode<synchronous>, transform_indices = @transform_3, window_bounds = array<i64: 128, 128>}, {pipeline_mode = #tpu.pipeline_mode<synchronous>, transform_indices = @transform_4, window_bounds = array<i64: 1, 128>}, {pipeline_mode = #tpu.pipeline_mode<synchronous>, transform_indices = @transform_5, window_bounds = array<i64: 128, 4>}, {pipeline_mode = #tpu.pipeline_mode<synchronous>, transform_indices = @transform_6, window_bounds = array<i64: 1, 4>}, {transform_indices = @transform_7, window_bounds = array<i64: 8, 4>}]} {
    %c0 = arith.constant 0 : index
    %c0_0 = arith.constant 0 : index
    %0 = vector.load %arg1[%c0, %c0_0] : memref<8x16xf32, #tpu.memory_space<vmem>>, vector<8x16xf32>
    %c0_1 = arith.constant 0 : index
    %c0_2 = arith.constant 0 : index
    %1 = vector.load %arg2[%c0_1, %c0_2] : memref<16x128xf32, #tpu.memory_space<vmem>>, vector<16x128xf32>
    %cst = arith.constant dense<0.000000e+00> : vector<8x128xf32>
    %2 = tpu.matmul %0, %1, %cst {dimension_numbers = #tpu.dot_dimension_numbers<[1], [0], [0], [1], [0, 0, 1, 1], [], []>} : vector<8x16xf32>, vector<16x128xf32>, vector<8x128xf32> -> vector<8x128xf32>
    %c0_3 = arith.constant 0 : index
    %c0_4 = arith.constant 0 : index
    %3 = vector.load %arg3[%c0_3, %c0_4] : memref<1x128xf32, #tpu.memory_space<vmem>>, vector<1x128xf32>
    %4 = vector.broadcast %3 : vector<1x128xf32> to vector<8x128xf32>
    %5 = arith.addf %2, %4 : vector<8x128xf32>
    %cst_5 = arith.constant 0.000000e+00 : f32
    %6 = vector.broadcast %cst_5 : f32 to vector<8x128xf32>
    %7 = arith.maximumf %5, %6 : vector<8x128xf32>
    %c0_6 = arith.constant 0 : index
    %c0_7 = arith.constant 0 : index
    %8 = vector.load %arg4[%c0_6, %c0_7] : memref<128x128xf32, #tpu.memory_space<vmem>>, vector<128x128xf32>
    %cst_8 = arith.constant dense<0.000000e+00> : vector<8x128xf32>
    %9 = tpu.matmul %7, %8, %cst_8 {dimension_numbers = #tpu.dot_dimension_numbers<[1], [0], [0], [1], [0, 0, 1, 1], [], []>} : vector<8x128xf32>, vector<128x128xf32>, vector<8x128xf32> -> vector<8x128xf32>
    %c0_9 = arith.constant 0 : index
    %c0_10 = arith.constant 0 : index
    %10 = vector.load %arg5[%c0_9, %c0_10] : memref<1x128xf32, #tpu.memory_space<vmem>>, vector<1x128xf32>
    %11 = vector.broadcast %10 : vector<1x128xf32> to vector<8x128xf32>
    %12 = arith.addf %9, %11 : vector<8x128xf32>
    %cst_11 = arith.constant 0.000000e+00 : f32
    %13 = vector.broadcast %cst_11 : f32 to vector<8x128xf32>
    %14 = arith.maximumf %12, %13 : vector<8x128xf32>
    %c0_12 = arith.constant 0 : index
    %c0_13 = arith.constant 0 : index
    %15 = vector.load %arg6[%c0_12, %c0_13] : memref<128x4xf32, #tpu.memory_space<vmem>>, vector<128x4xf32>
    %cst_14 = arith.constant dense<0.000000e+00> : vector<8x4xf32>
    %16 = tpu.matmul %14, %15, %cst_14 {dimension_numbers = #tpu.dot_dimension_numbers<[1], [0], [0], [1], [0, 0, 1, 1], [], []>} : vector<8x128xf32>, vector<128x4xf32>, vector<8x4xf32> -> vector<8x4xf32>
    %c0_15 = arith.constant 0 : index
    %c0_16 = arith.constant 0 : index
    %17 = vector.load %arg7[%c0_15, %c0_16] : memref<1x4xf32, #tpu.memory_space<vmem>>, vector<1x4xf32>
    %18 = vector.broadcast %17 : vector<1x4xf32> to vector<8x4xf32>
    %19 = arith.addf %16, %18 : vector<8x4xf32>
    %c0_17 = arith.constant 0 : index
    %c0_18 = arith.constant 0 : index
    %20 = vector.load %arg8[%c0_17, %c0_18] : memref<8x4xf32, #tpu.memory_space<vmem>>, vector<8x4xf32>
    tpu.vector_store %arg8[%c0_17, %c0_18], %19 {strides = array<i32>} : memref<8x4xf32, #tpu.memory_space<vmem>>, vector<8x4xf32>,
    return
  }
  func.func @transform_0(%arg0: i32) -> (i32, i32) {
    %c0_i32 = arith.constant 0 : i32
    %c0_i32_0 = arith.constant 0 : i32
    return %arg0, %c0_i32 : i32, i32
  }
  func.func @transform_1(%arg0: i32) -> (i32, i32) {
    %c0_i32 = arith.constant 0 : i32
    %c0_i32_0 = arith.constant 0 : i32
    %c0_i32_1 = arith.constant 0 : i32
    return %c0_i32, %c0_i32_0 : i32, i32
  }
  func.func @transform_2(%arg0: i32) -> (i32, i32) {
    %c0_i32 = arith.constant 0 : i32
    %c0_i32_0 = arith.constant 0 : i32
    %c0_i32_1 = arith.constant 0 : i32
    return %c0_i32, %c0_i32_0 : i32, i32
  }
  func.func @transform_3(%arg0: i32) -> (i32, i32) {
    %c0_i32 = arith.constant 0 : i32
    %c0_i32_0 = arith.constant 0 : i32
    %c0_i32_1 = arith.constant 0 : i32
    return %c0_i32, %c0_i32_0 : i32, i32
  }
  func.func @transform_4(%arg0: i32) -> (i32, i32) {
    %c0_i32 = arith.constant 0 : i32
    %c0_i32_0 = arith.constant 0 : i32
    %c0_i32_1 = arith.constant 0 : i32
    return %c0_i32, %c0_i32_0 : i32, i32
  }
  func.func @transform_5(%arg0: i32) -> (i32, i32) {
    %c0_i32 = arith.constant 0 : i32
    %c0_i32_0 = arith.constant 0 : i32
    %c0_i32_1 = arith.constant 0 : i32
    return %c0_i32, %c0_i32_0 : i32, i32
  }
  func.func @transform_6(%arg0: i32) -> (i32, i32) {
    %c0_i32 = arith.constant 0 : i32
    %c0_i32_0 = arith.constant 0 : i32
    %c0_i32_1 = arith.constant 0 : i32
    return %c0_i32, %c0_i32_0 : i32, i32
  }
  func.func @transform_7(%arg0: i32) -> (i32, i32) {
    %c0_i32 = arith.constant 0 : i32
    %c0_i32_0 = arith.constant 0 : i32
    return %arg0, %c0_i32 : i32, i32
  }
}

</mosaic_0001>

<llo_original>
// kernel: tpu_custom_call.1
$region0: #{tpu_custom_call.1}
  #allocation0 [shape = 'u32[]', space=smem, size = 0x4, offset = 0x4, fixed_abs, tag = 'smem constant byte address 0x4 - core index']
  #allocation1 [shape = 'u32[72,128]{1,0:T(1,128)}', space=vmem, size = 0x9000, scoped, tag = 'internal scratch']
  %s0 = inlined_call_operand.hbm [shape: f32[8,16], index: 0, kind: input, shape index: {}]
  %s1 = inlined_call_operand.hbm [shape: f32[16,128], index: 1, kind: input, shape index: {}]
  %s2 = inlined_call_operand.vmem [shape: f32[1,128], index: 2, kind: input, shape index: {}]
  %s3 = inlined_call_operand.vmem [shape: f32[128,128], index: 3, kind: input, shape index: {}]
  %s4 = inlined_call_operand.vmem [shape: f32[1,128], index: 4, kind: input, shape index: {}]
  %s5 = inlined_call_operand.vmem [shape: f32[128,4], index: 5, kind: input, shape index: {}]
  %s6 = inlined_call_operand.vmem [shape: f32[1,4], index: 6, kind: input, shape index: {}]
  %s7 = inlined_call_operand.vmem [shape: f32[8,4], index: 7, kind: output, shape index: {}]
  %s8 = sld [smem:[#allocation0]]
  $region46: #{tpu_custom_call.1} parent=0
    _
  %s10 = ssub.s32 1, %s8
  %s11 = scalar_select 0, %s10, %s8
  $region1: #{tpu_custom_call.1} parent=0
    #allocation2 [shape = 'u8[4096]{0}', space=vmem, size = 0x1000, scoped, tag = 'input window, operand 0, single buffered']
    #allocation3 [shape = 's32[1]{0}', space=sflag, size = 0x4, scoped, tag = 'scoped memory for tpu_custom_call.1']
    #allocation4 [shape = 'u8[8192]{0}', space=vmem, size = 0x2000, scoped, tag = 'input window, operand 1, single buffered']
    #allocation5 [shape = 's32[1]{0}', space=sflag, size = 0x4, scoped, tag = 'scoped memory for tpu_custom_call.1']
    %12 = vsyncpa [#allocation3], 0
    %13 = vsyncpa [#allocation5], 0
    // Predicated region
    $region2: #{tpu_custom_call.1} parent=1 // pred_check
      _
    $region3: #{tpu_custom_call.1} parent=1 // pred_check_branch
      %15 = sbr.rel (0) target = $region5
    $region4: #{tpu_custom_call.1} parent=1 // pred_region
      %17 = vsyncadd [#allocation3], 0
      %s19 = sshll.u32 %s0, 4
      %s20 = int_to_ptr.hbm [resolvable:$true] %s19
      %s21 = sshll.u32 [#allocation2], 4
      %s22 = int_to_ptr.vmem [resolvable:$true] %s21
      %24 = dma.hbm_to_vmem [thread:$0]  %s20, 128, %s22, [#allocation3]
    $region5: #{tpu_custom_call.1} parent=1 // pred_fallthru
      _
    // Predicated region
    $region6: #{tpu_custom_call.1} parent=1 // pred_check
      _
    $region7: #{tpu_custom_call.1} parent=1 // pred_check_branch
      %26 = sbr.rel (0) target = $region9
    $region8: #{tpu_custom_call.1} parent=1 // pred_region
      %28 = vsyncadd [#allocation5], 0
      %s29 = sshll.u32 %s1, 4
      %s30 = int_to_ptr.hbm [resolvable:$true] %s29
      %s31 = sshll.u32 [#allocation4], 4
      %s32 = int_to_ptr.vmem [resolvable:$true] %s31
      %37 = dma.hbm_to_vmem [thread:$0]  %s30, 256, %s32, [#allocation5], 128, 128, 8
    $region9: #{tpu_custom_call.1} parent=1 // pred_fallthru
      _
    // Predicated region
    $region10: #{tpu_custom_call.1} parent=1 // pred_check
      _
    $region11: #{tpu_custom_call.1} parent=1 // pred_check_branch
      %39 = sbr.rel (0) target = $region13
    $region12: #{tpu_custom_call.1} parent=1 // pred_region
      _
    $region13: #{tpu_custom_call.1} parent=1 // pred_fallthru
      _
    // Predicated region
    $region14: #{tpu_custom_call.1} parent=1 // pred_check
      _
    $region15: #{tpu_custom_call.1} parent=1 // pred_check_branch
      %41 = sbr.rel (0) target = $region17
    $region16: #{tpu_custom_call.1} parent=1 // pred_region
      _
    $region17: #{tpu_custom_call.1} parent=1 // pred_fallthru
      _
    // Predicated region
    $region18: #{tpu_custom_call.1} parent=1 // pred_check
      _
    $region19: #{tpu_custom_call.1} parent=1 // pred_check_branch
      %43 = sbr.rel (0) target = $region21
    $region20: #{tpu_custom_call.1} parent=1 // pred_region
      _
    $region21: #{tpu_custom_call.1} parent=1 // pred_fallthru
      _
    // Predicated region
    $region22: #{tpu_custom_call.1} parent=1 // pred_check
      _
    $region23: #{tpu_custom_call.1} parent=1 // pred_check_branch
      %45 = sbr.rel (0) target = $region25
    $region24: #{tpu_custom_call.1} parent=1 // pred_region
      _
    $region25: #{tpu_custom_call.1} parent=1 // pred_fallthru
      _
    // Predicated region
    $region26: #{tpu_custom_call.1} parent=1 // pred_check
      _
    $region27: #{tpu_custom_call.1} parent=1 // pred_check_branch
      %47 = sbr.rel (0) target = $region29
    $region28: #{tpu_custom_call.1} parent=1 // pred_region
      _
    $region29: #{tpu_custom_call.1} parent=1 // pred_fallthru
      _
    // Predicated region
    $region30: #{tpu_custom_call.1} parent=1 // pred_check
      _
    $region31: #{tpu_custom_call.1} parent=1 // pred_check_branch
      %49 = sbr.rel (0) target = $region33
    $region32: #{tpu_custom_call.1} parent=1 // pred_region
      %51 = dma.done [#allocation3], 128
    $region33: #{tpu_custom_call.1} parent=1 // pred_fallthru
      _
    // Predicated region
    $region34: #{tpu_custom_call.1} parent=1 // pred_check
      _
    $region35: #{tpu_custom_call.1} parent=1 // pred_check_branch
      %53 = sbr.rel (0) target = $region37
    $region36: #{tpu_custom_call.1} parent=1 // pred_region
      %55 = dma.done [#allocation5], 256
    $region37: #{tpu_custom_call.1} parent=1 // pred_fallthru
      _
    %v56 = vld [vmem:[#allocation2] sm:$0xff]
    %v57 = vld [vmem:[#allocation4] sm:$0xff]
    %v58 = vld [vmem:[#allocation4 + $0x8] sm:$0xff]
    %v59 = vld [vmem:[%s2] sm:$0x1]
    %v61 = vperm.slane %v59, 0
    %vm63 = vcmask 130048
    %v65 = vsel %vm63, %v56, 0
    %67 = vmatpush.msra.mxu0 0.0
    %68 = vmatpush.msra.mxu0 0.0
    %69 = vmatpush.msra.mxu0 0.0
    %70 = vmatpush.msra.mxu0 0.0
    %71 = vmatpush.msra.mxu0 0.0
    %72 = vmatpush.msra.mxu0 0.0
    %73 = vmatpush.msra.mxu0 0.0
    %74 = vmatpush.msra.mxu0 0.0
    %75 = vmatpush.msra.mxu0 0.0
    %76 = vmatpush.msra.mxu0 0.0
    %77 = vmatpush.msra.mxu0 0.0
    %78 = vmatpush.msra.mxu0 0.0
    %79 = vmatpush.msra.mxu0 0.0
    %80 = vmatpush.msra.mxu0 0.0
    %81 = vmatpush.msra.mxu0 %v58
    %82 = vmatpush.msra.mxu0 %v57
    %83 = vmatmul.f32.gmra.mxu0 %v65
    %v84 = vpop.f32.mrf.mxu0
    %v85 = vadd.f32 %v61, %v84
    %86 = vdwg.mxu0
    %v87 = vmax.f32 %v85, 0.0
    %v88 = vld [vmem:[%s3] sm:$0xff]
    %v89 = vld [vmem:[%s3 + $0x8] sm:$0xff]
    %v90 = vld [vmem:[%s3 + $0x10] sm:$0xff]
    %v91 = vld [vmem:[%s3 + $0x18] sm:$0xff]
    %v92 = vld [vmem:[%s3 + $0x20] sm:$0xff]
    %v93 = vld [vmem:[%s3 + $0x28] sm:$0xff]
    %v94 = vld [vmem:[%s3 + $0x30] sm:$0xff]
    %v95 = vld [vmem:[%s3 + $0x38] sm:$0xff]
    %v96 = vld [vmem:[%s3 + $0x40] sm:$0xff]
    %v97 = vld [vmem:[%s3 + $0x48] sm:$0xff]
    %v98 = vld [vmem:[%s3 + $0x50] sm:$0xff]
    %v99 = vld [vmem:[%s3 + $0x58] sm:$0xff]
    %v100 = vld [vmem:[%s3 + $0x60] sm:$0xff]
    %v101 = vld [vmem:[%s3 + $0x68] sm:$0xff]
    %v102 = vld [vmem:[%s3 + $0x70] sm:$0xff]
    %v103 = vld [vmem:[%s3 + $0x78] sm:$0xff]
    %v104 = vld [vmem:[%s4] sm:$0x1]
    %v106 = vperm.slane %v104, 0
    %108 = vmatpush.msra.mxu0 %v103
    %109 = vmatpush.msra.mxu0 %v102
    %110 = vmatpush.msra.mxu0 %v101
    %111 = vmatpush.msra.mxu0 %v100
    %112 = vmatpush.msra.mxu0 %v99
    %113 = vmatpush.msra.mxu0 %v98
    %114 = vmatpush.msra.mxu0 %v97
    %115 = vmatpush.msra.mxu0 %v96
    %116 = vmatpush.msra.mxu0 %v95
    %117 = vmatpush.msra.mxu0 %v94
    %118 = vmatpush.msra.mxu0 %v93
    %119 = vmatpush.msra.mxu0 %v92
    %120 = vmatpush.msra.mxu0 %v91
    %121 = vmatpush.msra.mxu0 %v90
    %122 = vmatpush.msra.mxu0 %v89
    %123 = vmatpush.msra.mxu0 %v88
    %124 = vmatmul.f32.gmra.mxu0 %v87
    %v125 = vpop.f32.mrf.mxu0
    %v126 = vadd.f32 %v106, %v125
    %127 = vdwg.mxu0
    %v128 = vmax.f32 %v126, 0.0
    %v129 = vld [vmem:[%s5] sm:$0xff]
    %v130 = vld [vmem:[%s5 + $0x8] sm:$0xff]
    %v131 = vld [vmem:[%s5 + $0x10] sm:$0xff]
    %v132 = vld [vmem:[%s5 + $0x18] sm:$0xff]
    %v133 = vld [vmem:[%s5 + $0x20] sm:$0xff]
    %v134 = vld [vmem:[%s5 + $0x28] sm:$0xff]
    %v135 = vld [vmem:[%s5 + $0x30] sm:$0xff]
    %v136 = vld [vmem:[%s5 + $0x38] sm:$0xff]
    %v137 = vld [vmem:[%s5 + $0x40] sm:$0xff]
    %v138 = vld [vmem:[%s5 + $0x48] sm:$0xff]
    %v139 = vld [vmem:[%s5 + $0x50] sm:$0xff]
    %v140 = vld [vmem:[%s5 + $0x58] sm:$0xff]
    %v141 = vld [vmem:[%s5 + $0x60] sm:$0xff]
    %v142 = vld [vmem:[%s5 + $0x68] sm:$0xff]
    %v143 = vld [vmem:[%s5 + $0x70] sm:$0xff]
    %v144 = vld [vmem:[%s5 + $0x78] sm:$0xff]
    %v145 = vld [vmem:[%s6] sm:$0x1]
    %v147 = vperm.slane %v145, 0
    %149 = vmatpush.msra.mxu0 %v144
    %150 = vmatpush.msra.mxu0 %v143
    %151 = vmatpush.msra.mxu0 %v142
    %152 = vmatpush.msra.mxu0 %v141
    %153 = vmatpush.msra.mxu0 %v140
    %154 = vmatpush.msra.mxu0 %v139
    %155 = vmatpush.msra.mxu0 %v138
    %156 = vmatpush.msra.mxu0 %v137
    %157 = vmatpush.msra.mxu0 %v136
    %158 = vmatpush.msra.mxu0 %v135
    %159 = vmatpush.msra.mxu0 %v134
    %160 = vmatpush.msra.mxu0 %v133
    %161 = vmatpush.msra.mxu0 %v132
    %162 = vmatpush.msra.mxu0 %v131
    %163 = vmatpush.msra.mxu0 %v130
    %164 = vmatpush.msra.mxu0 %v129
    %165 = vmatmul.f32.gmra.mxu0 %v128
    %v166 = vpop.f32.mrf.mxu0
    %v167 = vadd.f32 %v147, %v166
    %168 = vdwg.mxu0
    %vm169 = vcmask 31744
    %170 = vst.msk [vmem:[%s7] sm:$0xff] %vm169, %v167
    // Predicated region
    $region38: #{tpu_custom_call.1} parent=1 // pred_check
      _
    $region39: #{tpu_custom_call.1} parent=1 // pred_check_branch
      %172 = sbr.rel (0) target = $region41
    $region40: #{tpu_custom_call.1} parent=1 // pred_region
      _
    $region41: #{tpu_custom_call.1} parent=1 // pred_fallthru
      _
    // Predicated region
    $region42: #{tpu_custom_call.1} parent=1 // pred_check
      _
    $region43: #{tpu_custom_call.1} parent=1 // pred_check_branch
      %174 = sbr.rel (0) target = $region45
    $region44: #{tpu_custom_call.1} parent=1 // pred_region
      _
    $region45: #{tpu_custom_call.1} parent=1 // pred_fallthru
      _
    %175 = vsyncpa [#allocation3], 1
    %176 = vsyncpa [#allocation5], 1

</llo_original>
